<compile_context>
chip_gen: v7x
topology: tpu7x:2x2x1
jax: 0.10.0
libtpu: 0.0.40
codegen_flags: <defaults>
</compile_context>

<pallas_src>
import functools

import jax
import jax.numpy as jnp
from jax.experimental import pallas as pl
from jax.experimental.pallas import tpu as pltpu


def _round_up(x, m):
    return ((x + m - 1) // m) * m


def _mlp_kernel(x_ref, w1_ref, b1_ref, w2_ref, b2_ref, o_ref, acc_ref):
    """One (batch tile, hidden_half chunk) step of fc1 -> ReLU -> fc2."""
    c = pl.program_id(1)

    @pl.when(c == 0)
    def _():
        acc_ref[...] = jnp.zeros_like(acc_ref)

    # fc1 chunk + bias + ReLU.  MXU accumulates in f32; epilogue stays f32.
    h = jnp.dot(x_ref[...].astype(w1_ref.dtype), w1_ref[...],
                preferred_element_type=jnp.float32)
    h = jnp.maximum(h + b1_ref[...], 0.0)
    # dropout (eval mode) -> identity.

    # fc2 chunk, accumulated over hidden_half chunks into f32 VMEM scratch.
    acc_ref[...] += jnp.dot(h.astype(w2_ref.dtype), w2_ref[...],
                            preferred_element_type=jnp.float32)

    @pl.when(c == pl.num_programs(1) - 1)
    def _():
        # dropout (eval mode) -> identity.
        o_ref[...] = (acc_ref[...] + b2_ref[...]).astype(o_ref.dtype)


def prepare_params(w1, b1, w2, b2, *, weight_dtype=None):
    """Pad parameters to lane-dense (multiple-of-128) shapes, once.

    w1: [hidden_dim, hidden_half]   (transpose of PyTorch fc1.weight)
    b1: [hidden_half]
    w2: [hidden_half, num_classes]  (transpose of PyTorch fc2.weight)
    b2: [num_classes]

    Biases are kept in float32; weights are optionally cast to `weight_dtype`
    (e.g. jnp.bfloat16 on v6e/v7x to halve HBM traffic and VMEM footprint).
    Zero padding keeps the result exact.
    """
    hidden_dim, hidden_half = w1.shape
    num_classes = w2.shape[1]
    k1_p = _round_up(hidden_dim, 128)
    hh_p = _round_up(hidden_half, 128)
    nc_p = _round_up(num_classes, 128)

    if weight_dtype is not None:
        w1 = w1.astype(weight_dtype)
        w2 = w2.astype(weight_dtype)
    w1_p = jnp.pad(w1, ((0, k1_p - hidden_dim), (0, hh_p - hidden_half)))
    b1_p = jnp.pad(b1.reshape(1, -1).astype(jnp.float32),
                   ((0, 0), (0, hh_p - hidden_half)))
    w2_p = jnp.pad(w2, ((0, hh_p - hidden_half), (0, nc_p - num_classes)))
    b2_p = jnp.pad(b2.reshape(1, -1).astype(jnp.float32),
                   ((0, 0), (0, nc_p - num_classes)))
    return (w1_p, b1_p, w2_p, b2_p), num_classes


@functools.partial(jax.jit, static_argnames=("num_classes", "block_m"))
def mlp_forward(x, w1_p, b1_p, w2_p, b2_p, *, num_classes, block_m=None):
    """x: [N, hidden_dim] -> [N, num_classes].  Eval-mode Mlp forward."""
    n, hidden_dim = x.shape
    k1_p, hh_p = w1_p.shape
    nc_p = w2_p.shape[1]
    x_isz = jnp.dtype(x.dtype).itemsize
    w_isz = jnp.dtype(w1_p.dtype).itemsize

    # Only the fc1 contraction (K) axis of x needs zero padding (garbage K
    # columns would corrupt valid rows; garbage batch rows would not).
    if hidden_dim != k1_p:
        x = jnp.pad(x, ((0, 0), (0, k1_p - hidden_dim)))

    # ---- batch tile: ~2 MiB of x per tile, clamped to [256, 2048], then to
    # the (8-aligned) batch extent; force >=2 grid steps when n allows so the
    # "parallel" batch axis can shard across both v7x TensorCores.
    if block_m is None:
        block_m = (2 << 20) // (k1_p * x_isz)
        block_m = max(256, min(2048, (block_m // 8) * 8))
    block_m = max(8, (min(block_m, _round_up(n, 8)) // 8) * 8)
    if n >= 16 and block_m >= _round_up(n, 8):
        block_m = _round_up((n + 1) // 2, 8)
    grid_m = pl.cdiv(n, block_m)

    # ---- hidden_half chunking (reduction axis, last in grid): bounds weight
    # blocks and the live h tile regardless of hidden_dim.
    if hh_p % 512 == 0:
        tc = 512
    elif hh_p % 256 == 0:
        tc = 256
    else:
        tc = 128
    grid_c = hh_p // tc

    # ---- explicit VMEM budget (double-buffered tiles + accumulator + h).
    needed = (2 * block_m * k1_p * x_isz        # x tiles
              + 2 * k1_p * tc * w_isz           # W1 chunk
              + 2 * tc * 4                      # b1 chunk (f32)
              + 2 * tc * nc_p * w_isz           # W2 chunk
              + 2 * nc_p * 4                    # b2 (f32)
              + 2 * block_m * nc_p * x_isz      # out tiles
              + block_m * nc_p * 4              # accumulator scratch
              + block_m * tc * 4)               # live h tile
    vmem_limit = int(min(max(2 * needed, 32 << 20), 64 << 20))

    cost = pl.CostEstimate(
        flops=2 * n * k1_p * hh_p + 2 * n * hh_p * nc_p,
        transcendentals=0,
        bytes_accessed=int(x.size * x_isz + w1_p.size * w_isz
                           + b1_p.size * 4 + w2_p.size * w_isz
                           + b2_p.size * 4 + n * nc_p * x_isz),
    )

    out_p = pl.pallas_call(
        _mlp_kernel,
        out_shape=jax.ShapeDtypeStruct((n, nc_p), x.dtype),
        grid_spec=pltpu.PrefetchScalarGridSpec(
            num_scalar_prefetch=0,
            grid=(grid_m, grid_c),
            in_specs=[
                # x: tile over batch, full (padded) feature width.
                pl.BlockSpec((block_m, k1_p), lambda i, c: (i, 0)),
                # W1 / b1: chunked along hidden_half.
                pl.BlockSpec((k1_p, tc), lambda i, c: (0, c)),
                pl.BlockSpec((1, tc), lambda i, c: (0, c)),
                # W2: chunked along its contraction (hidden_half) axis.
                pl.BlockSpec((tc, nc_p), lambda i, c: (c, 0)),
                # b2: constant block.
                pl.BlockSpec((1, nc_p), lambda i, c: (0, 0)),
            ],
            out_specs=pl.BlockSpec((block_m, nc_p), lambda i, c: (i, 0)),
            scratch_shapes=[pltpu.VMEM((block_m, nc_p), jnp.float32)],
        ),
        compiler_params=pltpu.CompilerParams(
            dimension_semantics=("parallel", "arbitrary"),
            vmem_limit_bytes=vmem_limit),
        cost_estimate=cost,
    )(x, w1_p, b1_p, w2_p, b2_p)

    # Slice away the padded class columns (batch was never padded).
    return out_p[:, :num_classes]


def init_params(key, hidden_dim, num_classes, dtype=jnp.float32):
    """PyTorch-Linear-style uniform init; weights stored as [in, out]."""
    k1, k2, k3, k4 = jax.random.split(key, 4)
    hidden_half = hidden_dim // 2
    bound1 = 1.0 / (hidden_dim ** 0.5)
    bound2 = 1.0 / (hidden_half ** 0.5)
    w1 = jax.random.uniform(k1, (hidden_dim, hidden_half), dtype, -bound1, bound1)
    b1 = jax.random.uniform(k2, (hidden_half,), dtype, -bound1, bound1)
    w2 = jax.random.uniform(k3, (hidden_half, num_classes), dtype, -bound2, bound2)
    b2 = jax.random.uniform(k4, (num_classes,), dtype, -bound2, bound2)
    return w1, b1, w2, b2


if __name__ == "__main__":
    hidden_dim = 32       # args.hidden_dim
    num_classes = 4       # args.num_classes
    batch = 8

    key = jax.random.PRNGKey(0)
    kx, kp = jax.random.split(key)
    x = jax.random.normal(kx, (batch, hidden_dim), dtype=jnp.float32)
    w1, b1, w2, b2 = init_params(kp, hidden_dim, num_classes)

    # Pure-JAX eval-mode reference.
    ref = jnp.maximum(x @ w1 + b1, 0.0) @ w2 + b2

    # f32 weights: exact match with the reference.
    (w1_p, b1_p, w2_p, b2_p), nc = prepare_params(w1, b1, w2, b2)
    out = jax.block_until_ready(
        mlp_forward(x, w1_p, b1_p, w2_p, b2_p, num_classes=nc))
    assert out.shape == (batch, num_classes)
    assert jnp.allclose(out, ref, atol=1e-5, rtol=1e-5)

    # bf16 weights (recommended fast path on v6e / v7x): same kernel.
    (w1_b, b1_b, w2_b, b2_b), _ = prepare_params(
        w1, b1, w2, b2, weight_dtype=jnp.bfloat16)
    out_bf16 = jax.block_until_ready(
        mlp_forward(x, w1_b, b1_b, w2_b, b2_b, num_classes=nc))
    assert out_bf16.shape == (batch, num_classes)
    assert jnp.allclose(out_bf16, ref, atol=1e-1, rtol=5e-2)

    print("KERNEL_OK")
</pallas_src>

<mosaic_0001>
module attributes {stable_mosaic.version = 11 : i64} {
  func.func @_mlp_kernel(%arg0: i32, %arg1: i32, %arg2: memref<8x128xf32, #tpu.memory_space<vmem>>, %arg3: memref<128x128xf32, #tpu.memory_space<vmem>>, %arg4: memref<1x128xf32, #tpu.memory_space<vmem>>, %arg5: memref<128x128xf32, #tpu.memory_space<vmem>>, %arg6: memref<1x128xf32, #tpu.memory_space<vmem>>, %arg7: memref<8x128xf32, #tpu.memory_space<vmem>>, %arg8: memref<8x128xf32, #tpu.memory_space<vmem>>) attributes {dimension_semantics = [#tpu.dimension_semantics<parallel>, #tpu.dimension_semantics<arbitrary>], iteration_bounds = array<i64: 1, 1>, scalar_prefetch = 0 : i64, scratch_operands = 1 : i64, tpu.core_type = #tpu.core_type<tc>, window_params = [{transform_indices = @transform_0, window_bounds = array<i64: 8, 128>}, {transform_indices = @transform_1, window_bounds = array<i64: 128, 128>}, {transform_indices = @transform_2, window_bounds = array<i64: 1, 128>}, {transform_indices = @transform_3, window_bounds = array<i64: 128, 128>}, {pipeline_mode = #tpu.pipeline_mode<synchronous>, transform_indices = @transform_4, window_bounds = array<i64: 1, 128>}, {transform_indices = @transform_5, window_bounds = array<i64: 8, 128>}]} {
    %c0_i32 = arith.constant 0 : i32
    %0 = arith.cmpi eq, %arg1, %c0_i32 : i32
    %1 = arith.extui %0 : i1 to i32
    %c0_i32_0 = arith.constant 0 : i32
    %2 = arith.cmpi ne, %1, %c0_i32_0 : i32
    scf.if %2 {
      %cst_16 = arith.constant 0.000000e+00 : f32
      %19 = vector.broadcast %cst_16 : f32 to vector<8x128xf32>
      %c0_17 = arith.constant 0 : index
      %c0_18 = arith.constant 0 : index
      %20 = vector.load %arg8[%c0_17, %c0_18] : memref<8x128xf32, #tpu.memory_space<vmem>>, vector<8x128xf32>
      tpu.vector_store %arg8[%c0_17, %c0_18], %19 {strides = array<i32>} : memref<8x128xf32, #tpu.memory_space<vmem>>, vector<8x128xf32>,
    } else {
    }
    %c0 = arith.constant 0 : index
    %c0_1 = arith.constant 0 : index
    %3 = vector.load %arg2[%c0, %c0_1] : memref<8x128xf32, #tpu.memory_space<vmem>>, vector<8x128xf32>
    %c0_2 = arith.constant 0 : index
    %c0_3 = arith.constant 0 : index
    %4 = vector.load %arg3[%c0_2, %c0_3] : memref<128x128xf32, #tpu.memory_space<vmem>>, vector<128x128xf32>
    %cst = arith.constant dense<0.000000e+00> : vector<8x128xf32>
    %5 = tpu.matmul %3, %4, %cst {dimension_numbers = #tpu.dot_dimension_numbers<[1], [0], [0], [1], [0, 0, 1, 1], [], []>} : vector<8x128xf32>, vector<128x128xf32>, vector<8x128xf32> -> vector<8x128xf32>
    %c0_4 = arith.constant 0 : index
    %c0_5 = arith.constant 0 : index
    %6 = vector.load %arg4[%c0_4, %c0_5] : memref<1x128xf32, #tpu.memory_space<vmem>>, vector<1x128xf32>
    %7 = vector.broadcast %6 : vector<1x128xf32> to vector<8x128xf32>
    %8 = arith.addf %5, %7 : vector<8x128xf32>
    %cst_6 = arith.constant 0.000000e+00 : f32
    %9 = vector.broadcast %cst_6 : f32 to vector<8x128xf32>
    %10 = arith.maximumf %8, %9 : vector<8x128xf32>
    %c0_7 = arith.constant 0 : index
    %c0_8 = arith.constant 0 : index
    %11 = vector.load %arg8[%c0_7, %c0_8] : memref<8x128xf32, #tpu.memory_space<vmem>>, vector<8x128xf32>
    %c0_9 = arith.constant 0 : index
    %c0_10 = arith.constant 0 : index
    %12 = vector.load %arg5[%c0_9, %c0_10] : memref<128x128xf32, #tpu.memory_space<vmem>>, vector<128x128xf32>
    %cst_11 = arith.constant dense<0.000000e+00> : vector<8x128xf32>
    %13 = tpu.matmul %10, %12, %cst_11 {dimension_numbers = #tpu.dot_dimension_numbers<[1], [0], [0], [1], [0, 0, 1, 1], [], []>} : vector<8x128xf32>, vector<128x128xf32>, vector<8x128xf32> -> vector<8x128xf32>
    %14 = arith.addf %11, %13 : vector<8x128xf32>
    %c0_12 = arith.constant 0 : index
    %c0_13 = arith.constant 0 : index
    %15 = vector.load %arg8[%c0_12, %c0_13] : memref<8x128xf32, #tpu.memory_space<vmem>>, vector<8x128xf32>
    tpu.vector_store %arg8[%c0_12, %c0_13], %14 {strides = array<i32>} : memref<8x128xf32, #tpu.memory_space<vmem>>, vector<8x128xf32>,
    %c0_i32_14 = arith.constant 0 : i32
    %16 = arith.cmpi eq, %arg1, %c0_i32_14 : i32
    %17 = arith.extui %16 : i1 to i32
    %c0_i32_15 = arith.constant 0 : i32
    %18 = arith.cmpi ne, %17, %c0_i32_15 : i32
    scf.if %18 {
      %c0_16 = arith.constant 0 : index
      %c0_17 = arith.constant 0 : index
      %19 = vector.load %arg8[%c0_16, %c0_17] : memref<8x128xf32, #tpu.memory_space<vmem>>, vector<8x128xf32>
      %c0_18 = arith.constant 0 : index
      %c0_19 = arith.constant 0 : index
      %20 = vector.load %arg6[%c0_18, %c0_19] : memref<1x128xf32, #tpu.memory_space<vmem>>, vector<1x128xf32>
      %21 = vector.broadcast %20 : vector<1x128xf32> to vector<8x128xf32>
      %22 = arith.addf %19, %21 : vector<8x128xf32>
      %c0_20 = arith.constant 0 : index
      %c0_21 = arith.constant 0 : index
      %23 = vector.load %arg7[%c0_20, %c0_21] : memref<8x128xf32, #tpu.memory_space<vmem>>, vector<8x128xf32>
      tpu.vector_store %arg7[%c0_20, %c0_21], %22 {strides = array<i32>} : memref<8x128xf32, #tpu.memory_space<vmem>>, vector<8x128xf32>,
    } else {
    }
    return
  }
  func.func @transform_0(%arg0: i32, %arg1: i32) -> (i32, i32) {
    %c0_i32 = arith.constant 0 : i32
    %c0_i32_0 = arith.constant 0 : i32
    return %arg0, %c0_i32 : i32, i32
  }
  func.func @transform_1(%arg0: i32, %arg1: i32) -> (i32, i32) {
    %c0_i32 = arith.constant 0 : i32
    %c0_i32_0 = arith.constant 0 : i32
    return %c0_i32, %arg1 : i32, i32
  }
  func.func @transform_2(%arg0: i32, %arg1: i32) -> (i32, i32) {
    %c0_i32 = arith.constant 0 : i32
    %c0_i32_0 = arith.constant 0 : i32
    return %c0_i32, %arg1 : i32, i32
  }
  func.func @transform_3(%arg0: i32, %arg1: i32) -> (i32, i32) {
    %c0_i32 = arith.constant 0 : i32
    %c0_i32_0 = arith.constant 0 : i32
    return %arg1, %c0_i32 : i32, i32
  }
  func.func @transform_4(%arg0: i32, %arg1: i32) -> (i32, i32) {
    %c0_i32 = arith.constant 0 : i32
    %c0_i32_0 = arith.constant 0 : i32
    %c0_i32_1 = arith.constant 0 : i32
    return %c0_i32, %c0_i32_0 : i32, i32
  }
  func.func @transform_5(%arg0: i32, %arg1: i32) -> (i32, i32) {
    %c0_i32 = arith.constant 0 : i32
    %c0_i32_0 = arith.constant 0 : i32
    return %arg0, %c0_i32 : i32, i32
  }
}

</mosaic_0001>

<llo_original>
// kernel: mlp_forward.1
$region0: #{mlp_forward.1}
  #allocation0 [shape = 'u32[]', space=smem, size = 0x4, offset = 0x4, fixed_abs, tag = 'smem constant byte address 0x4 - core index']
  #allocation1 [shape = 'u32[144,128]{1,0:T(1,128)}', space=vmem, size = 0x12000, scoped, tag = 'internal scratch']
  #allocation2 [shape = 'f32[8,128]{1,0:T(8,128)}', space=vmem, size = 0x1000, scoped, tag = 'scratch operand']
  %s0 = inlined_call_operand.vmem [shape: f32[8,128], index: 0, kind: input, shape index: {}]
  %s1 = inlined_call_operand.hbm [shape: f32[128,128], index: 1, kind: input, shape index: {}]
  %s2 = inlined_call_operand.vmem [shape: f32[1,128], index: 2, kind: input, shape index: {}]
  %s3 = inlined_call_operand.hbm [shape: f32[128,128], index: 3, kind: input, shape index: {}]
  %s4 = inlined_call_operand.vmem [shape: f32[1,128], index: 4, kind: input, shape index: {}]
  %s5 = inlined_call_operand.vmem [shape: f32[8,128], index: 5, kind: output, shape index: {}]
  %s6 = sld [smem:[#allocation0]]
  $region46: #{mlp_forward.1} parent=0
    _
  %s8 = ssub.s32 1, %s6
  %s9 = scalar_select 0, %s8, %s6
  $region1: #{mlp_forward.1} parent=0
    #allocation3 [shape = 'u8[65536]{0}', space=vmem, size = 0x10000, scoped, tag = 'input window, operand 1, single buffered']
    #allocation4 [shape = 's32[1]{0}', space=sflag, size = 0x4, scoped, tag = 'scoped memory for mlp_forward.1']
    #allocation5 [shape = 'u8[65536]{0}', space=vmem, size = 0x10000, scoped, tag = 'input window, operand 3, single buffered']
    #allocation6 [shape = 's32[1]{0}', space=sflag, size = 0x4, scoped, tag = 'scoped memory for mlp_forward.1']
    %10 = vsyncpa [#allocation4], 0
    %11 = vsyncpa [#allocation6], 0
    // Predicated region
    $region2: #{mlp_forward.1} parent=1 // pred_check
      _
    $region3: #{mlp_forward.1} parent=1 // pred_check_branch
      %13 = sbr.rel (0) target = $region5
    $region4: #{mlp_forward.1} parent=1 // pred_region
      _
    $region5: #{mlp_forward.1} parent=1 // pred_fallthru
      _
    // Predicated region
    $region6: #{mlp_forward.1} parent=1 // pred_check
      _
    $region7: #{mlp_forward.1} parent=1 // pred_check_branch
      %15 = sbr.rel (0) target = $region9
    $region8: #{mlp_forward.1} parent=1 // pred_region
      %s17 = ssub.s32 2048, 2048
      %18 = vsyncadd [#allocation4], %s17
      %s19 = sshll.u32 [#allocation3], 4
      %s20 = int_to_ptr.vmem [resolvable:$true] %s19
      %25 = dma.hbm_to_vmem [thread:$0]  %s1, 2048, %s20, [#allocation4], 128, 128, 8
    $region9: #{mlp_forward.1} parent=1 // pred_fallthru
      _
    // Predicated region
    $region10: #{mlp_forward.1} parent=1 // pred_check
      _
    $region11: #{mlp_forward.1} parent=1 // pred_check_branch
      %27 = sbr.rel (0) target = $region13
    $region12: #{mlp_forward.1} parent=1 // pred_region
      _
    $region13: #{mlp_forward.1} parent=1 // pred_fallthru
      _
    // Predicated region
    $region14: #{mlp_forward.1} parent=1 // pred_check
      _
    $region15: #{mlp_forward.1} parent=1 // pred_check_branch
      %29 = sbr.rel (0) target = $region17
    $region16: #{mlp_forward.1} parent=1 // pred_region
      %s31 = ssub.s32 2048, 2048
      %32 = vsyncadd [#allocation6], %s31
      %s33 = sshll.u32 [#allocation5], 4
      %s34 = int_to_ptr.vmem [resolvable:$true] %s33
      %39 = dma.hbm_to_vmem [thread:$0]  %s3, 2048, %s34, [#allocation6], 128, 128, 8
    $region17: #{mlp_forward.1} parent=1 // pred_fallthru
      _
    // Predicated region
    $region18: #{mlp_forward.1} parent=1 // pred_check
      _
    $region19: #{mlp_forward.1} parent=1 // pred_check_branch
      %41 = sbr.rel (0) target = $region21
    $region20: #{mlp_forward.1} parent=1 // pred_region
      _
    $region21: #{mlp_forward.1} parent=1 // pred_fallthru
      _
    // Predicated region
    $region22: #{mlp_forward.1} parent=1 // pred_check
      _
    $region23: #{mlp_forward.1} parent=1 // pred_check_branch
      %43 = sbr.rel (0) target = $region25
    $region24: #{mlp_forward.1} parent=1 // pred_region
      %44 = dma.done [#allocation4], 2048
    $region25: #{mlp_forward.1} parent=1 // pred_fallthru
      _
    // Predicated region
    $region26: #{mlp_forward.1} parent=1 // pred_check
      _
    $region27: #{mlp_forward.1} parent=1 // pred_check_branch
      %46 = sbr.rel (0) target = $region29
    $region28: #{mlp_forward.1} parent=1 // pred_region
      %47 = dma.done [#allocation6], 2048
    $region29: #{mlp_forward.1} parent=1 // pred_fallthru
      _
    %p48 = scmp.eq.s32.totalorder 0, 0
    // Predicated region
    $region30: #{mlp_forward.1} parent=1 // pred_check
      %p49 = pneg %p48
    $region31: #{mlp_forward.1} parent=1 // pred_check_branch
      %51 = sbr.rel (%p49) target = $region33
    $region32: #{mlp_forward.1} parent=1 // pred_region
      %52 = vst [vmem:[#allocation2] sm:$0xff] 0.0
    $region33: #{mlp_forward.1} parent=1 // pred_fallthru
      _
    %v53 = vld [vmem:[%s0] sm:$0xff]
    %v54 = vld [vmem:[#allocation3] sm:$0xff]
    %v55 = vld [vmem:[#allocation3 + $0x8] sm:$0xff]
    %v56 = vld [vmem:[#allocation3 + $0x10] sm:$0xff]
    %v57 = vld [vmem:[#allocation3 + $0x18] sm:$0xff]
    %v58 = vld [vmem:[#allocation3 + $0x20] sm:$0xff]
    %v59 = vld [vmem:[#allocation3 + $0x28] sm:$0xff]
    %v60 = vld [vmem:[#allocation3 + $0x30] sm:$0xff]
    %v61 = vld [vmem:[#allocation3 + $0x38] sm:$0xff]
    %v62 = vld [vmem:[#allocation3 + $0x40] sm:$0xff]
    %v63 = vld [vmem:[#allocation3 + $0x48] sm:$0xff]
    %v64 = vld [vmem:[#allocation3 + $0x50] sm:$0xff]
    %v65 = vld [vmem:[#allocation3 + $0x58] sm:$0xff]
    %v66 = vld [vmem:[#allocation3 + $0x60] sm:$0xff]
    %v67 = vld [vmem:[#allocation3 + $0x68] sm:$0xff]
    %v68 = vld [vmem:[#allocation3 + $0x70] sm:$0xff]
    %v69 = vld [vmem:[#allocation3 + $0x78] sm:$0xff]
    %v70 = vld [vmem:[%s2] sm:$0x1]
    %v72 = vlaneseq
    %v73 = vshrl.u32 %v72, 7
    %v74 = vsub.s32 0, %v73
    %v75 = vrot.slane %v70, %v74
    %77 = vmatprep.subr.mxu0 0.0
    %78 = vmatpush1.msra.mxu0 %v54
    %79 = vmatprep.subr.mxu0 0.0
    %80 = vmatpush1.msra.mxu0 %v55
    %81 = vmatprep.subr.mxu0 0.0
    %82 = vmatpush1.msra.mxu0 %v56
    %83 = vmatprep.subr.mxu0 0.0
    %84 = vmatpush1.msra.mxu0 %v57
    %85 = vmatprep.subr.mxu0 0.0
    %86 = vmatpush1.msra.mxu0 %v58
    %87 = vmatprep.subr.mxu0 0.0
    %88 = vmatpush1.msra.mxu0 %v59
    %89 = vmatprep.subr.mxu0 0.0
    %90 = vmatpush1.msra.mxu0 %v60
    %91 = vmatprep.subr.mxu0 0.0
    %92 = vmatpush1.msra.mxu0 %v61
    %93 = vmatprep.subr.mxu0 0.0
    %94 = vmatpush1.msra.mxu0 %v62
    %95 = vmatprep.subr.mxu0 0.0
    %96 = vmatpush1.msra.mxu0 %v63
    %97 = vmatprep.subr.mxu0 0.0
    %98 = vmatpush1.msra.mxu0 %v64
    %99 = vmatprep.subr.mxu0 0.0
    %100 = vmatpush1.msra.mxu0 %v65
    %101 = vmatprep.subr.mxu0 0.0
    %102 = vmatpush1.msra.mxu0 %v66
    %103 = vmatprep.subr.mxu0 0.0
    %104 = vmatpush1.msra.mxu0 %v67
    %105 = vmatprep.subr.mxu0 0.0
    %106 = vmatpush1.msra.mxu0 %v68
    %107 = vmatprep.subr.mxu0 0.0
    %108 = vmatpush1.msra.mxu0 %v69
    %109 = vmatprep.subr.mxu0 0.0
    %110 = vmatpush1.msra.mxu0 0.0
    %111 = vmatprep.subr.mxu0 0.0
    %112 = vmatpush1.msra.mxu0 0.0
    %113 = vmatprep.subr.mxu0 0.0
    %114 = vmatpush1.msra.mxu0 0.0
    %115 = vmatprep.subr.mxu0 0.0
    %116 = vmatpush1.msra.mxu0 0.0
    %117 = vmatprep.subr.mxu0 0.0
    %118 = vmatpush1.msra.mxu0 0.0
    %119 = vmatprep.subr.mxu0 0.0
    %120 = vmatpush1.msra.mxu0 0.0
    %121 = vmatprep.subr.mxu0 0.0
    %122 = vmatpush1.msra.mxu0 0.0
    %123 = vmatprep.subr.mxu0 0.0
    %124 = vmatpush1.msra.mxu0 0.0
    %125 = vmatprep.subr.mxu0 0.0
    %126 = vmatpush1.msra.mxu0 0.0
    %127 = vmatprep.subr.mxu0 0.0
    %128 = vmatpush1.msra.mxu0 0.0
    %129 = vmatprep.subr.mxu0 0.0
    %130 = vmatpush1.msra.mxu0 0.0
    %131 = vmatprep.subr.mxu0 0.0
    %132 = vmatpush1.msra.mxu0 0.0
    %133 = vmatprep.subr.mxu0 0.0
    %134 = vmatpush1.msra.mxu0 0.0
    %135 = vmatprep.subr.mxu0 0.0
    %136 = vmatpush1.msra.mxu0 0.0
    %137 = vmatprep.subr.mxu0 0.0
    %138 = vmatpush1.msra.mxu0 0.0
    %139 = vmatprep.subr.mxu0 0.0
    %140 = vmatpush1.msra.mxu0 0.0
    %141 = vmatprep.mubr.f32.mxu0 0.0
    %142 = vmatmul.mubr.f32.gmra.mrb[0].mxu0 %v53
    %v143 = vpop.f32.mrb[0].mxu0
    %v144 = vadd.f32 %v75, %v143
    %v145 = vpop.f32.mrb[0].mxu0
    %146 = vdwg.mxu0
    %v147 = vmax.f32 %v144, 0.0
    %v148 = vld [vmem:[#allocation2] sm:$0xff]
    %v149 = vld [vmem:[#allocation5] sm:$0xff]
    %v150 = vld [vmem:[#allocation5 + $0x8] sm:$0xff]
    %v151 = vld [vmem:[#allocation5 + $0x10] sm:$0xff]
    %v152 = vld [vmem:[#allocation5 + $0x18] sm:$0xff]
    %v153 = vld [vmem:[#allocation5 + $0x20] sm:$0xff]
    %v154 = vld [vmem:[#allocation5 + $0x28] sm:$0xff]
    %v155 = vld [vmem:[#allocation5 + $0x30] sm:$0xff]
    %v156 = vld [vmem:[#allocation5 + $0x38] sm:$0xff]
    %v157 = vld [vmem:[#allocation5 + $0x40] sm:$0xff]
    %v158 = vld [vmem:[#allocation5 + $0x48] sm:$0xff]
    %v159 = vld [vmem:[#allocation5 + $0x50] sm:$0xff]
    %v160 = vld [vmem:[#allocation5 + $0x58] sm:$0xff]
    %v161 = vld [vmem:[#allocation5 + $0x60] sm:$0xff]
    %v162 = vld [vmem:[#allocation5 + $0x68] sm:$0xff]
    %v163 = vld [vmem:[#allocation5 + $0x70] sm:$0xff]
    %v164 = vld [vmem:[#allocation5 + $0x78] sm:$0xff]
    %165 = vmatprep.subr.mxu0 0.0
    %166 = vmatpush1.msra.mxu0 %v149
    %167 = vmatprep.subr.mxu0 0.0
    %168 = vmatpush1.msra.mxu0 %v150
    %169 = vmatprep.subr.mxu0 0.0
    %170 = vmatpush1.msra.mxu0 %v151
    %171 = vmatprep.subr.mxu0 0.0
    %172 = vmatpush1.msra.mxu0 %v152
    %173 = vmatprep.subr.mxu0 0.0
    %174 = vmatpush1.msra.mxu0 %v153
    %175 = vmatprep.subr.mxu0 0.0
    %176 = vmatpush1.msra.mxu0 %v154
    %177 = vmatprep.subr.mxu0 0.0
    %178 = vmatpush1.msra.mxu0 %v155
    %179 = vmatprep.subr.mxu0 0.0
    %180 = vmatpush1.msra.mxu0 %v156
    %181 = vmatprep.subr.mxu0 0.0
    %182 = vmatpush1.msra.mxu0 %v157
    %183 = vmatprep.subr.mxu0 0.0
    %184 = vmatpush1.msra.mxu0 %v158
    %185 = vmatprep.subr.mxu0 0.0
    %186 = vmatpush1.msra.mxu0 %v159
    %187 = vmatprep.subr.mxu0 0.0
    %188 = vmatpush1.msra.mxu0 %v160
    %189 = vmatprep.subr.mxu0 0.0
    %190 = vmatpush1.msra.mxu0 %v161
    %191 = vmatprep.subr.mxu0 0.0
    %192 = vmatpush1.msra.mxu0 %v162
    %193 = vmatprep.subr.mxu0 0.0
    %194 = vmatpush1.msra.mxu0 %v163
    %195 = vmatprep.subr.mxu0 0.0
    %196 = vmatpush1.msra.mxu0 %v164
    %197 = vmatprep.subr.mxu0 0.0
    %198 = vmatpush1.msra.mxu0 0.0
    %199 = vmatprep.subr.mxu0 0.0
    %200 = vmatpush1.msra.mxu0 0.0
    %201 = vmatprep.subr.mxu0 0.0
    %202 = vmatpush1.msra.mxu0 0.0
    %203 = vmatprep.subr.mxu0 0.0
    %204 = vmatpush1.msra.mxu0 0.0
    %205 = vmatprep.subr.mxu0 0.0
    %206 = vmatpush1.msra.mxu0 0.0
    %207 = vmatprep.subr.mxu0 0.0
    %208 = vmatpush1.msra.mxu0 0.0
    %209 = vmatprep.subr.mxu0 0.0
    %210 = vmatpush1.msra.mxu0 0.0
    %211 = vmatprep.subr.mxu0 0.0
    %212 = vmatpush1.msra.mxu0 0.0
    %213 = vmatprep.subr.mxu0 0.0
    %214 = vmatpush1.msra.mxu0 0.0
    %215 = vmatprep.subr.mxu0 0.0
    %216 = vmatpush1.msra.mxu0 0.0
    %217 = vmatprep.subr.mxu0 0.0
    %218 = vmatpush1.msra.mxu0 0.0
    %219 = vmatprep.subr.mxu0 0.0
    %220 = vmatpush1.msra.mxu0 0.0
    %221 = vmatprep.subr.mxu0 0.0
    %222 = vmatpush1.msra.mxu0 0.0
    %223 = vmatprep.subr.mxu0 0.0
    %224 = vmatpush1.msra.mxu0 0.0
    %225 = vmatprep.subr.mxu0 0.0
    %226 = vmatpush1.msra.mxu0 0.0
    %227 = vmatprep.subr.mxu0 0.0
    %228 = vmatpush1.msra.mxu0 0.0
    %229 = vmatprep.mubr.f32.mxu0 0.0
    %230 = vmatmul.mubr.f32.gmra.mrb[0].mxu0 %v147
    %v231 = vpop.f32.mrb[0].mxu0
    %v232 = vadd.f32 0.0, %v231
    %v233 = vpop.f32.mrb[0].mxu0
    %234 = vdwg.mxu0
    %v235 = vadd.f32 %v148, %v232
    %236 = vst [vmem:[#allocation2] sm:$0xff] %v235
    // Predicated region
    $region34: #{mlp_forward.1} parent=1 // pred_check
      %p237 = pneg %p48
    $region35: #{mlp_forward.1} parent=1 // pred_check_branch
      %239 = sbr.rel (%p237) target = $region37
    $region36: #{mlp_forward.1} parent=1 // pred_region
      %v240 = vld [vmem:[#allocation2] sm:$0xff]
      %v241 = vld [vmem:[%s4] sm:$0x1]
      %v243 = vlaneseq
      %v244 = vshrl.u32 %v243, 7
      %v245 = vsub.s32 0, %v244
      %v246 = vrot.slane %v241, %v245
      %v248 = vadd.f32 %v240, %v246
      %249 = vst [vmem:[%s5] sm:$0xff] %v248
    $region37: #{mlp_forward.1} parent=1 // pred_fallthru
      _
    // Predicated region
    $region38: #{mlp_forward.1} parent=1 // pred_check
      _
    $region39: #{mlp_forward.1} parent=1 // pred_check_branch
      %251 = sbr.rel (0) target = $region41
    $region40: #{mlp_forward.1} parent=1 // pred_region
      _
    $region41: #{mlp_forward.1} parent=1 // pred_fallthru
      _
    // Predicated region
    $region42: #{mlp_forward.1} parent=1 // pred_check
      _
    $region43: #{mlp_forward.1} parent=1 // pred_check_branch
      %253 = sbr.rel (0) target = $region45
    $region44: #{mlp_forward.1} parent=1 // pred_region
      _
    $region45: #{mlp_forward.1} parent=1 // pred_fallthru
      _
    %254 = vsyncpa [#allocation4], 1
    %255 = vsyncpa [#allocation6], 1

</llo_original>
